<compile_context>
chip_gen: v7x
topology: tpu7x:2x2x1
jax: 0.10.0
libtpu: 0.0.40
codegen_flags: <defaults>
</compile_context>

<pallas_src>
import functools

import jax
import jax.numpy as jnp
from jax.experimental import pallas as pl
from jax.experimental.pallas import tpu as pltpu


def _ce_partial_kernel(logits_ref, targets_ref, out_ref, *, n_valid: int,
                       mask_rows: bool):
    """Per-block partial sum of row-wise cross entropy (logsumexp - target logit)."""
    x_nat = logits_ref[...]                                     # (TILE_N, C) native dtype
    tile_n, c = x_nat.shape

    # Target logit picked at native width (bf16 compare/select on v6e/v7x);
    # exactly one nonzero per row so the sum is exact; upcast once afterwards.
    col_ids = jax.lax.broadcasted_iota(jnp.int32, (tile_n, c), 1)
    x_tgt = jnp.sum(
        jnp.where(col_ids == targets_ref[...], x_nat, jnp.zeros_like(x_nat)),
        axis=-1, keepdims=True).astype(jnp.float32)             # (TILE_N, 1)

    x = x_nat.astype(jnp.float32)                               # (TILE_N, C)
    row_max = jnp.max(x, axis=-1, keepdims=True)                # (TILE_N, 1) XLU
    sum_exp = jnp.sum(jnp.exp(x - row_max), axis=-1, keepdims=True)  # (TILE_N, 1)

    ce = jnp.log(sum_exp) + row_max - x_tgt                     # (TILE_N, 1)

    if mask_rows:
        # Rows past the true batch size (partial last block -> garbage data)
        # must contribute 0.  Each row's ce is independent, so a plain select
        # is sufficient (NaN/Inf in masked rows cannot leak through).
        row_ids = (pl.program_id(0) * tile_n
                   + jax.lax.broadcasted_iota(jnp.int32, (tile_n, 1), 0))
        ce = jnp.where(row_ids < n_valid, ce, 0.0)

    partial = jnp.sum(ce)                                       # scalar
    out_ref[...] = jnp.broadcast_to(partial, out_ref.shape)     # lane-dense tile


def _default_vmem_limit_bytes() -> int:
    """Generation-aware scoped-VMEM limit: 64 MiB on 128-MiB chips (v5e/v6e),
    ~48 MiB on v7x (64 MiB physical), conservative fallback if query fails."""
    phys = 64 * 1024 * 1024          # conservative (v7x per-TC VMEM) fallback
    try:
        info = pltpu.get_tpu_info()
        phys = int(getattr(info, "vmem_capacity_bytes", phys))
    except Exception:
        pass
    return max(16 * 1024 * 1024,
               min(64 * 1024 * 1024, phys - 16 * 1024 * 1024))


def _choose_tile_n(n: int, c: int, itemsize: int, vmem_limit: int) -> int:
    """Largest batch tile whose full per-step working set fits the scoped limit:
    2x native input buffers (double-buffered pipeline) + ~4 f32-wide temporaries
    (f32 cast, exp term, int32 lane iota, select product)."""
    bytes_per_row = c * (2 * itemsize + 4 * 4)
    budget = vmem_limit - 4 * 1024 * 1024        # headroom: targets, output, misc
    rows = max(8, budget // max(1, bytes_per_row))
    rows = (int(rows) // 8) * 8

    # Keep >= 2 grid blocks when there is more than one row-tile's worth of
    # work, so v7x's two TensorCores can split the batch across the grid.
    if n > 8:
        half = ((-(-n // 2)) + 7) // 8 * 8
        rows = min(rows, max(8, half))

    n_ceil = ((n + 7) // 8) * 8
    return max(8, min(rows, n_ceil))


def focal_loss(logits: jax.Array, targets: jax.Array, *, gamma: float = 0.0,
               eps: float = 1e-7, tile_n=None, vmem_limit_bytes=None) -> jax.Array:
    """Pallas TPU FocalLoss forward. logits: (N, C) float; targets: (N,) int."""
    del eps  # unused by the reference forward (kept for signature parity)
    n, c = logits.shape

    if vmem_limit_bytes is None:
        vmem_limit_bytes = _default_vmem_limit_bytes()
    if tile_n is None:
        tile_n = _choose_tile_n(n, c, logits.dtype.itemsize, vmem_limit_bytes)
    tile_n = max(8, (int(tile_n) // 8) * 8)

    num_blocks = pl.cdiv(n, tile_n)
    mask_rows = (n % tile_n != 0)                # partial last block -> mask rows
    targets_2d = targets.astype(jnp.int32).reshape(n, 1)

    kernel = functools.partial(_ce_partial_kernel, n_valid=n, mask_rows=mask_rows)

    partials = pl.pallas_call(
        kernel,
        out_shape=jax.ShapeDtypeStruct((num_blocks, 8, 128), jnp.float32),
        grid=(num_blocks,),
        in_specs=[
            pl.BlockSpec((tile_n, c), lambda i: (i, 0)),        # logits tile (native dtype)
            pl.BlockSpec((tile_n, 1), lambda i: (i, 0)),        # targets tile
        ],
        out_specs=pl.BlockSpec((1, 8, 128), lambda i: (i, 0, 0)),
        compiler_params=pltpu.CompilerParams(
            dimension_semantics=("parallel",),
            vmem_limit_bytes=int(vmem_limit_bytes),
        ),
    )(logits, targets_2d)

    # Tiny scalar epilogue in plain JAX: reduction='mean', then focal modulation.
    ce_mean = jnp.sum(partials[:, 0, 0]) / jnp.float32(n)
    if float(gamma) == 0.0:
        return ce_mean                                          # (1 - p)**0 == 1
    probs = jnp.exp(-ce_mean)
    return (1.0 - probs) ** jnp.float32(gamma) * ce_mean


def _focal_loss_ref(logits, targets, gamma):
    # Pure-JAX reference mirroring torch.nn.CrossEntropyLoss(reduction='mean').
    logits = logits.astype(jnp.float32)
    lse = jax.nn.logsumexp(logits, axis=-1)
    tgt = jnp.take_along_axis(
        logits, targets[:, None].astype(jnp.int32), axis=-1)[:, 0]
    ce = jnp.mean(lse - tgt)
    probs = jnp.exp(-ce)
    return (1.0 - probs) ** gamma * ce if gamma != 0.0 else ce


if __name__ == "__main__":
    key = jax.random.PRNGKey(0)
    k1, k2, k3, k4, k5, k6, k7, k8 = jax.random.split(key, 8)

    # Primary module-sized case (batch=8, classes=32); default and non-trivial gamma.
    N, C = 8, 32
    logits = jax.random.normal(k1, (N, C), dtype=jnp.float32)
    targets = jax.random.randint(k2, (N,), 0, C, dtype=jnp.int32)
    for gamma in (0.0, 2.0):
        out = jax.block_until_ready(focal_loss(logits, targets, gamma=gamma))
        ref = _focal_loss_ref(logits, targets, gamma)
        assert jnp.allclose(out, ref, rtol=1e-5, atol=1e-6), (gamma, float(out), float(ref))

    # Multi-block grid + in-kernel row masking (no wrapper padding; N % tile_n != 0).
    N2, C2 = 200, 96
    logits2 = jax.random.normal(k3, (N2, C2), dtype=jnp.float32)
    targets2 = jax.random.randint(k4, (N2,), 0, C2, dtype=jnp.int32)
    out2 = jax.block_until_ready(focal_loss(logits2, targets2, gamma=2.0, tile_n=64))
    ref2 = _focal_loss_ref(logits2, targets2, 2.0)
    assert jnp.allclose(out2, ref2, rtol=1e-5, atol=1e-5), (float(out2), float(ref2))

    # Ragged N with auto tile selection (partial last block, default tiling path).
    N4, C4 = 50, 48
    logits4 = jax.random.normal(k7, (N4, C4), dtype=jnp.float32)
    targets4 = jax.random.randint(k8, (N4,), 0, C4, dtype=jnp.int32)
    out4 = jax.block_until_ready(focal_loss(logits4, targets4, gamma=2.0))
    ref4 = _focal_loss_ref(logits4, targets4, 2.0)
    assert jnp.allclose(out4, ref4, rtol=1e-5, atol=1e-5), (float(out4), float(ref4))

    # Native-dtype path (no wrapper f32 copy): bf16 logits, bf16 target pick in-kernel.
    N3, C3 = 64, 128
    logits3 = jax.random.normal(k5, (N3, C3), dtype=jnp.bfloat16)
    targets3 = jax.random.randint(k6, (N3,), 0, C3, dtype=jnp.int32)
    out3 = jax.block_until_ready(focal_loss(logits3, targets3, gamma=2.0))
    ref3 = _focal_loss_ref(logits3, targets3, 2.0)
    assert jnp.allclose(out3, ref3, rtol=1e-4, atol=1e-5), (float(out3), float(ref3))

    print("KERNEL_OK")
</pallas_src>

<mosaic_0001>
module attributes {stable_mosaic.version = 11 : i64} {
  func.func @_ce_partial_kernel(%arg0: i32, %arg1: memref<8x32xf32, #tpu.memory_space<vmem>>, %arg2: memref<8x1xi32, #tpu.memory_space<vmem>>, %arg3: memref<1x8x128xf32, #tpu.memory_space<vmem>>) attributes {dimension_semantics = [#tpu.dimension_semantics<parallel>], iteration_bounds = array<i64: 1>, scalar_prefetch = 0 : i64, scratch_operands = 0 : i64, tpu.core_type = #tpu.core_type<tc>, window_params = [{transform_indices = @transform_0, window_bounds = array<i64: 8, 32>}, {transform_indices = @transform_1, window_bounds = array<i64: 8, 1>}, {transform_indices = @transform_2, window_bounds = array<i64: 1, 8, 128>}]} {
    %c0 = arith.constant 0 : index
    %c0_0 = arith.constant 0 : index
    %0 = vector.load %arg1[%c0, %c0_0] : memref<8x32xf32, #tpu.memory_space<vmem>>, vector<8x32xf32>
    %1 = tpu.iota {dimensions = array<i32: 1>} : vector<8x32xi32>
    %c0_1 = arith.constant 0 : index
    %c0_2 = arith.constant 0 : index
    %2 = vector.load %arg2[%c0_1, %c0_2] : memref<8x1xi32, #tpu.memory_space<vmem>>, vector<8x1xi32>
    %3 = vector.broadcast %2 : vector<8x1xi32> to vector<8x32xi32>
    %4 = arith.cmpi eq, %1, %3 : vector<8x32xi32>
    %cst = arith.constant 0.000000e+00 : f32
    %5 = vector.broadcast %cst : f32 to vector<8x32xf32>
    %6 = arith.select %4, %0, %5 : vector<8x32xi1>, vector<8x32xf32>
    %cst_3 = arith.constant dense<0.000000e+00> : vector<8xf32>
    %7 = vector.multi_reduction <add>, %6, %cst_3 [1] : vector<8x32xf32> to vector<8xf32>
    %8 = vector.shape_cast %7 : vector<8xf32> to vector<8x1xf32>
    %cst_4 = arith.constant dense<0xFF800000> : vector<8xf32>
    %9 = vector.multi_reduction <maximumf>, %0, %cst_4 [1] : vector<8x32xf32> to vector<8xf32>
    %10 = vector.shape_cast %9 : vector<8xf32> to vector<8x1xf32>
    %11 = vector.broadcast %10 : vector<8x1xf32> to vector<8x32xf32>
    %12 = arith.subf %0, %11 : vector<8x32xf32>
    %13 = math.exp %12 : vector<8x32xf32>
    %cst_5 = arith.constant dense<0.000000e+00> : vector<8xf32>
    %14 = vector.multi_reduction <add>, %13, %cst_5 [1] : vector<8x32xf32> to vector<8xf32>
    %15 = vector.shape_cast %14 : vector<8xf32> to vector<8x1xf32>
    %16 = math.log %15 : vector<8x1xf32>
    %17 = arith.addf %16, %10 : vector<8x1xf32>
    %18 = arith.subf %17, %8 : vector<8x1xf32>
    %19 = vector.shape_cast %18 : vector<8x1xf32> to vector<1x8x1xf32>
    %cst_6 = arith.constant dense<0.000000e+00> : vector<1xf32>
    %20 = vector.multi_reduction <add>, %19, %cst_6 [1, 2] : vector<1x8x1xf32> to vector<1xf32>
    %21 = vector.shape_cast %20 : vector<1xf32> to vector<1x1x1xf32>
    %22 = vector.extract %21[0, 0, 0] : f32 from vector<1x1x1xf32>
    %23 = vector.broadcast %22 : f32 to vector<1x8x128xf32>
    %c0_7 = arith.constant 0 : index
    %c0_8 = arith.constant 0 : index
    %c0_9 = arith.constant 0 : index
    %24 = vector.load %arg3[%c0_7, %c0_8, %c0_9] : memref<1x8x128xf32, #tpu.memory_space<vmem>>, vector<1x8x128xf32>
    tpu.vector_store %arg3[%c0_7, %c0_8, %c0_9], %23 {strides = array<i32>} : memref<1x8x128xf32, #tpu.memory_space<vmem>>, vector<1x8x128xf32>,
    return
  }
  func.func @transform_0(%arg0: i32) -> (i32, i32) {
    %c0_i32 = arith.constant 0 : i32
    %c0_i32_0 = arith.constant 0 : i32
    return %arg0, %c0_i32 : i32, i32
  }
  func.func @transform_1(%arg0: i32) -> (i32, i32) {
    %c0_i32 = arith.constant 0 : i32
    %c0_i32_0 = arith.constant 0 : i32
    return %arg0, %c0_i32 : i32, i32
  }
  func.func @transform_2(%arg0: i32) -> (i32, i32, i32) {
    %c0_i32 = arith.constant 0 : i32
    %c0_i32_0 = arith.constant 0 : i32
    %c0_i32_1 = arith.constant 0 : i32
    return %arg0, %c0_i32, %c0_i32_0 : i32, i32, i32
  }
}

</mosaic_0001>

<llo_original>
// kernel: tpu_custom_call.1
$region0: #{tpu_custom_call.1}
  #allocation0 [shape = 'u32[]', space=smem, size = 0x4, offset = 0x4, fixed_abs, tag = 'smem constant byte address 0x4 - core index']
  #allocation1 [shape = 'u32[144,128]{1,0:T(1,128)}', space=vmem, size = 0x12000, scoped, tag = 'internal scratch']
  %s0 = inlined_call_operand.vmem [shape: f32[8,32], index: 0, kind: input, shape index: {}]
  %s1 = inlined_call_operand.vmem [shape: s32[8,1], index: 1, kind: input, shape index: {}]
  %s2 = inlined_call_operand.hbm [shape: f32[1,8,128], index: 2, kind: output, shape index: {}]
  %s3 = sld [smem:[#allocation0]]
  $region18: #{tpu_custom_call.1} parent=0
    _
  %s5 = ssub.s32 1, %s3
  %s6 = scalar_select 0, %s5, %s3
  $region1: #{tpu_custom_call.1} parent=0
    #allocation2 [shape = 'u8[4096]{0}', space=vmem, size = 0x1000, scoped, tag = 'output window, operand 0, single buffered']
    #allocation3 [shape = 's32[1]{0}', space=sflag, size = 0x4, scoped, tag = 'scoped memory for tpu_custom_call.1']
    %7 = vsyncpa [#allocation3], 0
    // Predicated region
    $region2: #{tpu_custom_call.1} parent=1 // pred_check
      _
    $region3: #{tpu_custom_call.1} parent=1 // pred_check_branch
      %9 = sbr.rel (0) target = $region5
    $region4: #{tpu_custom_call.1} parent=1 // pred_region
      _
    $region5: #{tpu_custom_call.1} parent=1 // pred_fallthru
      _
    // Predicated region
    $region6: #{tpu_custom_call.1} parent=1 // pred_check
      _
    $region7: #{tpu_custom_call.1} parent=1 // pred_check_branch
      %11 = sbr.rel (0) target = $region9
    $region8: #{tpu_custom_call.1} parent=1 // pred_region
      _
    $region9: #{tpu_custom_call.1} parent=1 // pred_fallthru
      _
    %v12 = vld [vmem:[%s0] sm:$0xff]
    %v13 = vlaneseq
    %v14 = vand.u32 %v13, 127
    %v15 = vld [vmem:[%s1] sm:$0xff]
    %16 = vset.pattern.permute.xlu0 0
    %17 = vperm.xlu0 %16, %v15
    %v18 = vpop.permute.xlu0 %17
    %vm19 = vcmp.eq.s32.totalorder %v14, %v18
    %v20 = vsel %vm19, %v12, 0.0
    %vm21 = vcmask 261120
    %v22 = vsel %vm21, %v20, 0.0
    %23 = vadd.xlane.f32.xlu0 %v22
    %v24 = vpop.xlane.xlu0 %23
    %v25 = vsel %vm21, %v12, -inf
    %26 = vmax.xlane.f32.xlu0 %v25
    %v27 = vpop.xlane.xlu0 %26
    %v28 = vsub.f32 %v12, %v27
    %v29 = vmul.f32 %v28, 1.442695
    %v30 = vpow.pop %v29
    %v31 = vsel %vm21, %v30, 0.0
    %32 = vadd.xlane.f32.xlu0 %v31
    %v33 = vpop.xlane.xlu0 %32
    %v34 = vlog2.pop %v33
    %v35 = vmul.f32 %v34, 0.6931472
    %v36 = vadd.f32 %v35, %v27
    %v37 = vsub.f32 %v36, %v24
    %vm38 = vcmask 7168
    %v39 = vsel %vm38, %v37, 0.0
    %40 = vadd.xlane.f32.xlu0 %v39
    %v41 = vpop.xlane.xlu0 %40
    %v42 = vrot.slane %v41, 4
    %v43 = vadd.f32 %v41, %v42
    %v44 = vrot.slane %v43, 2
    %v45 = vadd.f32 %v43, %v44
    %v46 = vrot.slane %v45, 1
    %v47 = vadd.f32 %v45, %v46
    %s48 = vtos %v47
    %v49 = vstv %s48
    %50 = vst [vmem:[#allocation2] sm:$0xff] %v49
    // Predicated region
    $region10: #{tpu_custom_call.1} parent=1 // pred_check
      _
    $region11: #{tpu_custom_call.1} parent=1 // pred_check_branch
      %52 = sbr.rel (0) target = $region13
    $region12: #{tpu_custom_call.1} parent=1 // pred_region
      %s54 = ssub.s32 128, 128
      %55 = vsyncadd [#allocation3], %s54
      %s57 = sshll.u32 [#allocation2], 4
      %s58 = int_to_ptr.vmem [resolvable:$true] %s57
      %60 = dma.vmem_to_hbm [thread:$0]  %s58, 128, %s2, [#allocation3]
    $region13: #{tpu_custom_call.1} parent=1 // pred_fallthru
      _
    // Predicated region
    $region14: #{tpu_custom_call.1} parent=1 // pred_check
      _
    $region15: #{tpu_custom_call.1} parent=1 // pred_check_branch
      %62 = sbr.rel (0) target = $region17
    $region16: #{tpu_custom_call.1} parent=1 // pred_region
      %63 = dma.done [#allocation3], 128
    $region17: #{tpu_custom_call.1} parent=1 // pred_fallthru
      _
    %64 = vsyncpa [#allocation3], 1

</llo_original>
